<compile_context>
chip_gen: v5e
topology: v5e:2x2
jax: 0.10.0
libtpu: 0.0.40
codegen_flags: <defaults>
</compile_context>

<pallas_src>
import functools

import jax
import jax.numpy as jnp
from jax import lax
from jax.experimental import pallas as pl
from jax.experimental.pallas import tpu as pltpu

_SUBLANE = 8  # f32 sublane tile


def _ceil_to(x, m):
    return (x + m - 1) // m * m


def _block_kernel(xph_ref, w1_ref, w2_ref, ws_ref,
                  g1_ref, be1_ref, g2_ref, be2_ref, bs_ref,
                  o_ref,
                  *, N, K, L1, L2, Lout, stride, conv1_pad,
                  pool_size, pool_pad, eps):
    f32 = jnp.float32
    s = stride

    # Phase p holds the zero-padded input at positions p, p+s, p+2s, ... with
    # lane index = position_index * N + batch (batch folded into lanes).
    xph = [xph_ref[p] for p in range(s)]
    w1 = w1_ref[...]          # (K, Cout8, Cin8)
    w2 = w2_ref[...]          # (K, Cout8, Cout8)
    ws = ws_ref[...]          # (K, Cout8, Cin8)

    def tap_conv(w, srcs, taps, mlen):
        # 1-D conv as K accumulated (Cout8, C8) x (C8, mlen*N) MXU matmuls on
        # contiguous lane slices: no im2col buffer, no selection matmuls.
        acc = None
        for k, (p, off) in enumerate(taps):
            src = srcs[p][:, off * N:(off + mlen) * N]
            term = jnp.dot(w[k], src, preferred_element_type=f32)
            acc = term if acc is None else acc + term
        return acc

    def bn_relu(parts, g, be, count):
        # Train-mode BatchNorm, one-pass batch statistics (biased variance).
        # Variance clamped at 0 to guard against catastrophic cancellation.
        ssum = sum(jnp.sum(p, axis=1, keepdims=True) for p in parts)
        sqsum = sum(jnp.sum(p * p, axis=1, keepdims=True) for p in parts)
        mean = ssum * (1.0 / count)
        var = jnp.maximum(sqsum * (1.0 / count) - mean * mean, 0.0)
        scale = lax.rsqrt(var + eps) * g
        shift = be - mean * scale
        return [jnp.maximum(p * scale + shift, 0.0) for p in parts]

    # ---- conv1 (stride 1, zero pad conv1_pad; padding already applied in the
    #      wrapper).  Computed directly phase-split by `stride` so the later
    #      strided convs only need contiguous lane slices.  Bias b1 omitted:
    #      cancelled exactly by the batch-stat BN that follows. ----
    a1ph = []
    for q in range(s):
        L1q = (L1 - q + s - 1) // s
        taps = [((q + k) % s, (q + k) // s) for k in range(K)]
        a1ph.append(tap_conv(w1, xph, taps, L1q))
    a1ph = bn_relu(a1ph, g1_ref[...], be1_ref[...], N * L1)

    # ---- conv2 (stride s, no pad): tap k reads a1 phase k%s at offset k//s.
    #      Bias b2 omitted for the same reason as b1. ----
    taps2 = [(k % s, k // s) for k in range(K)]
    a2 = tap_conv(w2, a1ph, taps2, L2)
    (a2,) = bn_relu([a2], g2_ref[...], be2_ref[...], N * L2)

    # ---- MaxPool1d(pool_size, stride=1, padding=pool_pad), in registers.
    #      Zero fill == -inf fill because a2 >= 0 post-ReLU and every window
    #      overlaps at least one real element (pool_pad < pool_size). ----
    if pool_pad > 0:
        zpad = jnp.zeros((a2.shape[0], pool_pad * N), f32)
        a2p = jnp.concatenate([zpad, a2, zpad], axis=1)
    else:
        a2p = a2
    pooled = a2p[:, 0:Lout * N]
    for d in range(1, pool_size):
        pooled = jnp.maximum(pooled, a2p[:, d * N:(d + Lout) * N])

    # ---- skip conv (stride s, no pad, keeps its bias) reuses the padded
    #      phase-split input: x[m*s + k] = xpad[m*s + k + conv1_pad]. ----
    taps_sk = [((k + conv1_pad) % s, (k + conv1_pad) // s) for k in range(K)]
    skip = tap_conv(ws, xph, taps_sk, Lout) + bs_ref[...]

    o_ref[...] = pooled + skip


def block_forward_pallas(x_ncl, params, *, kernel_size, pool_size, stride,
                         conv1_pad=2, pool_pad=2, eps=1e-5):
    f32 = jnp.float32
    N, Cin, L = x_ncl.shape
    K = kernel_size
    Cout = params["w1"].shape[0]

    L1 = L + 2 * conv1_pad - K + 1              # conv1 out (stride 1)
    L2 = (L1 - K) // stride + 1                 # conv2 out (stride s)
    Lout = L2 + 2 * pool_pad - pool_size + 1    # maxpool out (stride 1)
    Ls = (L - K) // stride + 1                  # skip out
    assert Lout == Ls, "hyper-parameters must make net/skip lengths agree"
    assert pool_pad < pool_size, "zero-fill pooling requires pool_pad < pool_size"
    assert L1 >= K and L2 >= 1 and Lout >= 1

    # Channel counts padded to sublane multiples; padded channels stay exact
    # zeros end-to-end and are sliced off at the end.
    Cin8 = _ceil_to(Cin, _SUBLANE)
    Cout8 = _ceil_to(Cout, _SUBLANE)

    # ---- input layout plumbing (all linear cost, done once by XLA):
    #      NCL -> (Cin8, L, N) so batch folds into the lane axis, zero-pad the
    #      length (conv1's padding), then split into `stride` phases so every
    #      in-kernel conv tap is a contiguous lane slice. ----
    Lp = L + 2 * conv1_pad
    Lph = _ceil_to(Lp, stride) // stride
    xp = jnp.pad(x_ncl.astype(f32), ((0, 0), (0, Cin8 - Cin), (0, 0)))
    xt = jnp.transpose(xp, (1, 2, 0))                            # (Cin8, L, N)
    xt = jnp.pad(xt, ((0, 0),
                      (conv1_pad, Lph * stride - L - conv1_pad), (0, 0)))
    xph = jnp.stack([xt[:, p::stride, :] for p in range(stride)], axis=0)
    xph = xph.reshape(stride, Cin8, Lph * N)

    def prep_w(w, cin_pad):   # (Cout, Cin_w, K) -> (K, Cout8, cin_pad)
        w = w.astype(f32)
        w = jnp.pad(w, ((0, Cout8 - Cout), (0, cin_pad - w.shape[1]), (0, 0)))
        return jnp.transpose(w, (2, 0, 1))

    def prep_c(v, fill):      # (Cout,) -> (Cout8, 1)
        v = jnp.pad(v.astype(f32), (0, Cout8 - Cout), constant_values=fill)
        return v.reshape(Cout8, 1)

    w1r = prep_w(params["w1"], Cin8)
    w2r = prep_w(params["w2"], Cout8)
    wsr = prep_w(params["ws"], Cin8)
    g1, be1 = prep_c(params["g1"], 1.0), prep_c(params["be1"], 0.0)
    g2, be2 = prep_c(params["g2"], 1.0), prep_c(params["be2"], 0.0)
    bs = prep_c(params["bs"], 0.0)
    # NOTE: conv biases b1/b2 are intentionally not passed: train-mode
    # batch-statistics BN removes any per-channel constant added before it.

    kernel = functools.partial(
        _block_kernel, N=N, K=K, L1=L1, L2=L2, Lout=Lout, stride=stride,
        conv1_pad=conv1_pad, pool_size=pool_size, pool_pad=pool_pad, eps=eps)

    args = (xph, w1r, w2r, wsr, g1, be1, g2, be2, bs)
    in_bytes = sum(4 * int(a.size) for a in args)
    out_bytes = 4 * Cout8 * Lout * N
    # Live VMEM = inputs + output + the value-level activations (a1 phases,
    # a2, padded pool strip, pooled, skip); everything stays VMEM-resident.
    live_bytes = (in_bytes + out_bytes
                  + 4 * Cout8 * N * (L1 + L2 + (L2 + 2 * pool_pad) + 2 * Lout))
    vmem_limit = min(max(4 << 20, 8 * live_bytes), 48 << 20)

    conv_flops = 2 * N * K * (Cin8 * Cout8 * L1 + Cout8 * Cout8 * L2
                              + Cin8 * Cout8 * Lout)
    vpu_flops = N * Cout8 * (6 * L1 + 6 * L2 + pool_size * Lout + Lout)

    vmem = pl.BlockSpec(memory_space=pltpu.MemorySpace.VMEM)
    out2d = pl.pallas_call(
        kernel,
        out_shape=jax.ShapeDtypeStruct((Cout8, Lout * N), f32),
        in_specs=[vmem] * len(args),
        out_specs=vmem,
        compiler_params=pltpu.CompilerParams(vmem_limit_bytes=int(vmem_limit)),
        cost_estimate=pl.CostEstimate(
            flops=int(conv_flops + vpu_flops),
            transcendentals=int(2 * Cout8),
            bytes_accessed=int(in_bytes + out_bytes)),
    )(*args)

    # Lane-dense kernel output (Cout8, Lout*N) back to NCL; drop channel pad.
    out = jnp.transpose(out2d.reshape(Cout8, Lout, N), (2, 0, 1))
    return out[:, :Cout, :]


def block_forward_ref(x, p, *, kernel_size, pool_size, stride, eps=1e-5):
    """Pure-JAX reference (NCL layout), mirrors the PyTorch module (train())."""
    def conv1d(h, w, b, s, pad):
        out = lax.conv_general_dilated(
            h, w, window_strides=(s,), padding=[(pad, pad)],
            dimension_numbers=("NCH", "OIH", "NCH"))
        return out + b[None, :, None]

    def bn(h, g, be):
        m = h.mean(axis=(0, 2), keepdims=True)
        v = ((h - m) ** 2).mean(axis=(0, 2), keepdims=True)
        return (h - m) / jnp.sqrt(v + eps) * g[None, :, None] + be[None, :, None]

    skip = conv1d(x, p["ws"], p["bs"], stride, 0)
    h = conv1d(x, p["w1"], p["b1"], 1, 2)
    h = jax.nn.relu(bn(h, p["g1"], p["be1"]))
    h = conv1d(h, p["w2"], p["b2"], stride, 0)
    h = jax.nn.relu(bn(h, p["g2"], p["be2"]))
    h = lax.reduce_window(h, -jnp.inf, lax.max, (1, 1, pool_size), (1, 1, 1),
                          [(0, 0), (0, 0), (2, 2)])
    return h + skip


def _make_params(key, Cin, Cout, K):
    ks = jax.random.split(key, 10)
    return {
        "w1": 0.3 * jax.random.normal(ks[0], (Cout, Cin, K), jnp.float32),
        "b1": 0.1 * jax.random.normal(ks[1], (Cout,), jnp.float32),
        "g1": 1.0 + 0.1 * jax.random.normal(ks[2], (Cout,), jnp.float32),
        "be1": 0.1 * jax.random.normal(ks[3], (Cout,), jnp.float32),
        "w2": 0.3 * jax.random.normal(ks[4], (Cout, Cout, K), jnp.float32),
        "b2": 0.1 * jax.random.normal(ks[5], (Cout,), jnp.float32),
        "g2": 1.0 + 0.1 * jax.random.normal(ks[6], (Cout,), jnp.float32),
        "be2": 0.1 * jax.random.normal(ks[7], (Cout,), jnp.float32),
        "ws": 0.3 * jax.random.normal(ks[8], (Cout, Cin, K), jnp.float32),
        "bs": 0.1 * jax.random.normal(ks[9], (Cout,), jnp.float32),
    }


if __name__ == "__main__":
    K, pool, stride = 5, 5, 2
    key = jax.random.PRNGKey(0)

    # (N, Cin, Cout, L): a small generic Block, a GasNet-first-block shape,
    # and an odd-length case (unequal stride phases).
    configs = [(2, 4, 8, 16), (2, 1, 16, 32), (2, 3, 8, 17)]
    for cfg_key, (N, Cin, Cout, L) in zip(jax.random.split(key, len(configs)),
                                          configs):
        kx, kp = jax.random.split(cfg_key)
        x = jax.random.normal(kx, (N, Cin, L), jnp.float32)
        params = _make_params(kp, Cin, Cout, K)

        out = block_forward_pallas(x, params, kernel_size=K, pool_size=pool,
                                   stride=stride)
        out = jax.block_until_ready(out)

        ref = block_forward_ref(x, params, kernel_size=K, pool_size=pool,
                                stride=stride)
        expect = (N, Cout, (L - K) // stride + 1)
        assert out.shape == ref.shape == expect, (out.shape, ref.shape, expect)
        err = float(jnp.max(jnp.abs(out - ref)))
        assert jnp.allclose(out, ref, rtol=2e-3, atol=2e-3), err

    print("KERNEL_OK")
</pallas_src>

<mosaic_0001>
module attributes {stable_mosaic.version = 11 : i64} {
  func.func @_block_kernel(%arg0: memref<2x8x20xf32, #tpu.memory_space<vmem>>, %arg1: memref<5x8x8xf32, #tpu.memory_space<vmem>>, %arg2: memref<5x8x8xf32, #tpu.memory_space<vmem>>, %arg3: memref<5x8x8xf32, #tpu.memory_space<vmem>>, %arg4: memref<8x1xf32, #tpu.memory_space<vmem>>, %arg5: memref<8x1xf32, #tpu.memory_space<vmem>>, %arg6: memref<8x1xf32, #tpu.memory_space<vmem>>, %arg7: memref<8x1xf32, #tpu.memory_space<vmem>>, %arg8: memref<8x1xf32, #tpu.memory_space<vmem>>, %arg9: memref<8x12xf32, #tpu.memory_space<vmem>>) attributes {dimension_semantics = [], scalar_prefetch = 0 : i64, scratch_operands = 0 : i64, tpu.core_type = #tpu.core_type<tc>} {
    %c0 = arith.constant 0 : index
    %c0_0 = arith.constant 0 : index
    %c0_1 = arith.constant 0 : index
    %0 = vector.load %arg0[%c0, %c0_0, %c0_1] : memref<2x8x20xf32, #tpu.memory_space<vmem>>, vector<1x8x20xf32>
    %1 = vector.shape_cast %0 : vector<1x8x20xf32> to vector<8x20xf32>
    %c1 = arith.constant 1 : index
    %c0_2 = arith.constant 0 : index
    %c0_3 = arith.constant 0 : index
    %2 = vector.load %arg0[%c1, %c0_2, %c0_3] : memref<2x8x20xf32, #tpu.memory_space<vmem>>, vector<1x8x20xf32>
    %3 = vector.shape_cast %2 : vector<1x8x20xf32> to vector<8x20xf32>
    %c0_4 = arith.constant 0 : index
    %c0_5 = arith.constant 0 : index
    %c0_6 = arith.constant 0 : index
    %4 = vector.load %arg1[%c0_4, %c0_5, %c0_6] : memref<5x8x8xf32, #tpu.memory_space<vmem>>, vector<5x8x8xf32>
    %c0_7 = arith.constant 0 : index
    %c0_8 = arith.constant 0 : index
    %c0_9 = arith.constant 0 : index
    %5 = vector.load %arg2[%c0_7, %c0_8, %c0_9] : memref<5x8x8xf32, #tpu.memory_space<vmem>>, vector<5x8x8xf32>
    %c0_10 = arith.constant 0 : index
    %c0_11 = arith.constant 0 : index
    %c0_12 = arith.constant 0 : index
    %6 = vector.load %arg3[%c0_10, %c0_11, %c0_12] : memref<5x8x8xf32, #tpu.memory_space<vmem>>, vector<5x8x8xf32>
    %7 = vector.extract_strided_slice %1 {offsets = [0, 0], sizes = [8, 16], strides = [1, 1]} : vector<8x20xf32> to vector<8x16xf32>
    %8 = vector.extract_strided_slice %4 {offsets = [0, 0, 0], sizes = [1, 8, 8], strides = [1, 1, 1]} : vector<5x8x8xf32> to vector<1x8x8xf32>
    %9 = vector.shape_cast %8 : vector<1x8x8xf32> to vector<8x8xf32>
    %cst = arith.constant dense<0.000000e+00> : vector<8x16xf32>
    %10 = tpu.matmul %9, %7, %cst {dimension_numbers = #tpu.dot_dimension_numbers<[1], [0], [0], [1], [0, 0, 1, 1], [], []>} : vector<8x8xf32>, vector<8x16xf32>, vector<8x16xf32> -> vector<8x16xf32>
    %11 = vector.extract_strided_slice %3 {offsets = [0, 0], sizes = [8, 16], strides = [1, 1]} : vector<8x20xf32> to vector<8x16xf32>
    %12 = vector.extract_strided_slice %4 {offsets = [1, 0, 0], sizes = [1, 8, 8], strides = [1, 1, 1]} : vector<5x8x8xf32> to vector<1x8x8xf32>
    %13 = vector.shape_cast %12 : vector<1x8x8xf32> to vector<8x8xf32>
    %cst_13 = arith.constant dense<0.000000e+00> : vector<8x16xf32>
    %14 = tpu.matmul %13, %11, %cst_13 {dimension_numbers = #tpu.dot_dimension_numbers<[1], [0], [0], [1], [0, 0, 1, 1], [], []>} : vector<8x8xf32>, vector<8x16xf32>, vector<8x16xf32> -> vector<8x16xf32>
    %15 = arith.addf %10, %14 : vector<8x16xf32>
    %16 = vector.extract_strided_slice %1 {offsets = [0, 2], sizes = [8, 16], strides = [1, 1]} : vector<8x20xf32> to vector<8x16xf32>
    %17 = vector.extract_strided_slice %4 {offsets = [2, 0, 0], sizes = [1, 8, 8], strides = [1, 1, 1]} : vector<5x8x8xf32> to vector<1x8x8xf32>
    %18 = vector.shape_cast %17 : vector<1x8x8xf32> to vector<8x8xf32>
    %cst_14 = arith.constant dense<0.000000e+00> : vector<8x16xf32>
    %19 = tpu.matmul %18, %16, %cst_14 {dimension_numbers = #tpu.dot_dimension_numbers<[1], [0], [0], [1], [0, 0, 1, 1], [], []>} : vector<8x8xf32>, vector<8x16xf32>, vector<8x16xf32> -> vector<8x16xf32>
    %20 = arith.addf %15, %19 : vector<8x16xf32>
    %21 = vector.extract_strided_slice %3 {offsets = [0, 2], sizes = [8, 16], strides = [1, 1]} : vector<8x20xf32> to vector<8x16xf32>
    %22 = vector.extract_strided_slice %4 {offsets = [3, 0, 0], sizes = [1, 8, 8], strides = [1, 1, 1]} : vector<5x8x8xf32> to vector<1x8x8xf32>
    %23 = vector.shape_cast %22 : vector<1x8x8xf32> to vector<8x8xf32>
    %cst_15 = arith.constant dense<0.000000e+00> : vector<8x16xf32>
    %24 = tpu.matmul %23, %21, %cst_15 {dimension_numbers = #tpu.dot_dimension_numbers<[1], [0], [0], [1], [0, 0, 1, 1], [], []>} : vector<8x8xf32>, vector<8x16xf32>, vector<8x16xf32> -> vector<8x16xf32>
    %25 = arith.addf %20, %24 : vector<8x16xf32>
    %26 = vector.extract_strided_slice %1 {offsets = [0, 4], sizes = [8, 16], strides = [1, 1]} : vector<8x20xf32> to vector<8x16xf32>
    %27 = vector.extract_strided_slice %4 {offsets = [4, 0, 0], sizes = [1, 8, 8], strides = [1, 1, 1]} : vector<5x8x8xf32> to vector<1x8x8xf32>
    %28 = vector.shape_cast %27 : vector<1x8x8xf32> to vector<8x8xf32>
    %cst_16 = arith.constant dense<0.000000e+00> : vector<8x16xf32>
    %29 = tpu.matmul %28, %26, %cst_16 {dimension_numbers = #tpu.dot_dimension_numbers<[1], [0], [0], [1], [0, 0, 1, 1], [], []>} : vector<8x8xf32>, vector<8x16xf32>, vector<8x16xf32> -> vector<8x16xf32>
    %30 = arith.addf %25, %29 : vector<8x16xf32>
    %31 = vector.extract_strided_slice %3 {offsets = [0, 0], sizes = [8, 16], strides = [1, 1]} : vector<8x20xf32> to vector<8x16xf32>
    %32 = vector.extract_strided_slice %4 {offsets = [0, 0, 0], sizes = [1, 8, 8], strides = [1, 1, 1]} : vector<5x8x8xf32> to vector<1x8x8xf32>
    %33 = vector.shape_cast %32 : vector<1x8x8xf32> to vector<8x8xf32>
    %cst_17 = arith.constant dense<0.000000e+00> : vector<8x16xf32>
    %34 = tpu.matmul %33, %31, %cst_17 {dimension_numbers = #tpu.dot_dimension_numbers<[1], [0], [0], [1], [0, 0, 1, 1], [], []>} : vector<8x8xf32>, vector<8x16xf32>, vector<8x16xf32> -> vector<8x16xf32>
    %35 = vector.extract_strided_slice %1 {offsets = [0, 2], sizes = [8, 16], strides = [1, 1]} : vector<8x20xf32> to vector<8x16xf32>
    %36 = vector.extract_strided_slice %4 {offsets = [1, 0, 0], sizes = [1, 8, 8], strides = [1, 1, 1]} : vector<5x8x8xf32> to vector<1x8x8xf32>
    %37 = vector.shape_cast %36 : vector<1x8x8xf32> to vector<8x8xf32>
    %cst_18 = arith.constant dense<0.000000e+00> : vector<8x16xf32>
    %38 = tpu.matmul %37, %35, %cst_18 {dimension_numbers = #tpu.dot_dimension_numbers<[1], [0], [0], [1], [0, 0, 1, 1], [], []>} : vector<8x8xf32>, vector<8x16xf32>, vector<8x16xf32> -> vector<8x16xf32>
    %39 = arith.addf %34, %38 : vector<8x16xf32>
    %40 = vector.extract_strided_slice %3 {offsets = [0, 2], sizes = [8, 16], strides = [1, 1]} : vector<8x20xf32> to vector<8x16xf32>
    %41 = vector.extract_strided_slice %4 {offsets = [2, 0, 0], sizes = [1, 8, 8], strides = [1, 1, 1]} : vector<5x8x8xf32> to vector<1x8x8xf32>
    %42 = vector.shape_cast %41 : vector<1x8x8xf32> to vector<8x8xf32>
    %cst_19 = arith.constant dense<0.000000e+00> : vector<8x16xf32>
    %43 = tpu.matmul %42, %40, %cst_19 {dimension_numbers = #tpu.dot_dimension_numbers<[1], [0], [0], [1], [0, 0, 1, 1], [], []>} : vector<8x8xf32>, vector<8x16xf32>, vector<8x16xf32> -> vector<8x16xf32>
    %44 = arith.addf %39, %43 : vector<8x16xf32>
    %45 = vector.extract_strided_slice %1 {offsets = [0, 4], sizes = [8, 16], strides = [1, 1]} : vector<8x20xf32> to vector<8x16xf32>
    %46 = vector.extract_strided_slice %4 {offsets = [3, 0, 0], sizes = [1, 8, 8], strides = [1, 1, 1]} : vector<5x8x8xf32> to vector<1x8x8xf32>
    %47 = vector.shape_cast %46 : vector<1x8x8xf32> to vector<8x8xf32>
    %cst_20 = arith.constant dense<0.000000e+00> : vector<8x16xf32>
    %48 = tpu.matmul %47, %45, %cst_20 {dimension_numbers = #tpu.dot_dimension_numbers<[1], [0], [0], [1], [0, 0, 1, 1], [], []>} : vector<8x8xf32>, vector<8x16xf32>, vector<8x16xf32> -> vector<8x16xf32>
    %49 = arith.addf %44, %48 : vector<8x16xf32>
    %50 = vector.extract_strided_slice %3 {offsets = [0, 4], sizes = [8, 16], strides = [1, 1]} : vector<8x20xf32> to vector<8x16xf32>
    %51 = vector.extract_strided_slice %4 {offsets = [4, 0, 0], sizes = [1, 8, 8], strides = [1, 1, 1]} : vector<5x8x8xf32> to vector<1x8x8xf32>
    %52 = vector.shape_cast %51 : vector<1x8x8xf32> to vector<8x8xf32>
    %cst_21 = arith.constant dense<0.000000e+00> : vector<8x16xf32>
    %53 = tpu.matmul %52, %50, %cst_21 {dimension_numbers = #tpu.dot_dimension_numbers<[1], [0], [0], [1], [0, 0, 1, 1], [], []>} : vector<8x8xf32>, vector<8x16xf32>, vector<8x16xf32> -> vector<8x16xf32>
    %54 = arith.addf %49, %53 : vector<8x16xf32>
    %c0_22 = arith.constant 0 : index
    %c0_23 = arith.constant 0 : index
    %55 = vector.load %arg4[%c0_22, %c0_23] : memref<8x1xf32, #tpu.memory_space<vmem>>, vector<8x1xf32>
    %c0_24 = arith.constant 0 : index
    %c0_25 = arith.constant 0 : index
    %56 = vector.load %arg5[%c0_24, %c0_25] : memref<8x1xf32, #tpu.memory_space<vmem>>, vector<8x1xf32>
    %cst_26 = arith.constant dense<0.000000e+00> : vector<8xf32>
    %57 = vector.multi_reduction <add>, %30, %cst_26 [1] : vector<8x16xf32> to vector<8xf32>
    %58 = vector.shape_cast %57 : vector<8xf32> to vector<8x1xf32>
    %cst_27 = arith.constant 0.000000e+00 : f32
    %59 = vector.broadcast %cst_27 : f32 to vector<8x1xf32>
    %60 = arith.addf %59, %58 : vector<8x1xf32>
    %cst_28 = arith.constant dense<0.000000e+00> : vector<8xf32>
    %61 = vector.multi_reduction <add>, %54, %cst_28 [1] : vector<8x16xf32> to vector<8xf32>
    %62 = vector.shape_cast %61 : vector<8xf32> to vector<8x1xf32>
    %63 = arith.addf %60, %62 : vector<8x1xf32>
    %64 = arith.mulf %30, %30 : vector<8x16xf32>
    %cst_29 = arith.constant dense<0.000000e+00> : vector<8xf32>
    %65 = vector.multi_reduction <add>, %64, %cst_29 [1] : vector<8x16xf32> to vector<8xf32>
    %66 = vector.shape_cast %65 : vector<8xf32> to vector<8x1xf32>
    %cst_30 = arith.constant 0.000000e+00 : f32
    %67 = vector.broadcast %cst_30 : f32 to vector<8x1xf32>
    %68 = arith.addf %67, %66 : vector<8x1xf32>
    %69 = arith.mulf %54, %54 : vector<8x16xf32>
    %cst_31 = arith.constant dense<0.000000e+00> : vector<8xf32>
    %70 = vector.multi_reduction <add>, %69, %cst_31 [1] : vector<8x16xf32> to vector<8xf32>
    %71 = vector.shape_cast %70 : vector<8xf32> to vector<8x1xf32>
    %72 = arith.addf %68, %71 : vector<8x1xf32>
    %cst_32 = arith.constant 3.125000e-02 : f32
    %73 = vector.broadcast %cst_32 : f32 to vector<8x1xf32>
    %74 = arith.mulf %63, %73 : vector<8x1xf32>
    %cst_33 = arith.constant 3.125000e-02 : f32
    %75 = vector.broadcast %cst_33 : f32 to vector<8x1xf32>
    %76 = arith.mulf %72, %75 : vector<8x1xf32>
    %77 = arith.mulf %74, %74 : vector<8x1xf32>
    %78 = arith.subf %76, %77 : vector<8x1xf32>
    %cst_34 = arith.constant 0.000000e+00 : f32
    %79 = vector.broadcast %cst_34 : f32 to vector<8x1xf32>
    %80 = arith.maximumf %78, %79 : vector<8x1xf32>
    %cst_35 = arith.constant 9.99999974E-6 : f32
    %81 = vector.broadcast %cst_35 : f32 to vector<8x1xf32>
    %82 = arith.addf %80, %81 : vector<8x1xf32>
    %83 = math.rsqrt %82 : vector<8x1xf32>
    %84 = arith.mulf %83, %55 : vector<8x1xf32>
    %85 = arith.mulf %74, %84 : vector<8x1xf32>
    %86 = arith.subf %56, %85 : vector<8x1xf32>
    %87 = vector.broadcast %84 : vector<8x1xf32> to vector<8x16xf32>
    %88 = arith.mulf %30, %87 : vector<8x16xf32>
    %89 = vector.broadcast %86 : vector<8x1xf32> to vector<8x16xf32>
    %90 = arith.addf %88, %89 : vector<8x16xf32>
    %cst_36 = arith.constant 0.000000e+00 : f32
    %91 = vector.broadcast %cst_36 : f32 to vector<8x16xf32>
    %92 = arith.maximumf %90, %91 : vector<8x16xf32>
    %93 = vector.broadcast %84 : vector<8x1xf32> to vector<8x16xf32>
    %94 = arith.mulf %54, %93 : vector<8x16xf32>
    %95 = vector.broadcast %86 : vector<8x1xf32> to vector<8x16xf32>
    %96 = arith.addf %94, %95 : vector<8x16xf32>
    %cst_37 = arith.constant 0.000000e+00 : f32
    %97 = vector.broadcast %cst_37 : f32 to vector<8x16xf32>
    %98 = arith.maximumf %96, %97 : vector<8x16xf32>
    %99 = vector.extract_strided_slice %92 {offsets = [0, 0], sizes = [8, 12], strides = [1, 1]} : vector<8x16xf32> to vector<8x12xf32>
    %100 = vector.extract_strided_slice %5 {offsets = [0, 0, 0], sizes = [1, 8, 8], strides = [1, 1, 1]} : vector<5x8x8xf32> to vector<1x8x8xf32>
    %101 = vector.shape_cast %100 : vector<1x8x8xf32> to vector<8x8xf32>
    %cst_38 = arith.constant dense<0.000000e+00> : vector<8x12xf32>
    %102 = tpu.matmul %101, %99, %cst_38 {dimension_numbers = #tpu.dot_dimension_numbers<[1], [0], [0], [1], [0, 0, 1, 1], [], []>} : vector<8x8xf32>, vector<8x12xf32>, vector<8x12xf32> -> vector<8x12xf32>
    %103 = vector.extract_strided_slice %98 {offsets = [0, 0], sizes = [8, 12], strides = [1, 1]} : vector<8x16xf32> to vector<8x12xf32>
    %104 = vector.extract_strided_slice %5 {offsets = [1, 0, 0], sizes = [1, 8, 8], strides = [1, 1, 1]} : vector<5x8x8xf32> to vector<1x8x8xf32>
    %105 = vector.shape_cast %104 : vector<1x8x8xf32> to vector<8x8xf32>
    %cst_39 = arith.constant dense<0.000000e+00> : vector<8x12xf32>
    %106 = tpu.matmul %105, %103, %cst_39 {dimension_numbers = #tpu.dot_dimension_numbers<[1], [0], [0], [1], [0, 0, 1, 1], [], []>} : vector<8x8xf32>, vector<8x12xf32>, vector<8x12xf32> -> vector<8x12xf32>
    %107 = arith.addf %102, %106 : vector<8x12xf32>
    %108 = vector.extract_strided_slice %92 {offsets = [0, 2], sizes = [8, 12], strides = [1, 1]} : vector<8x16xf32> to vector<8x12xf32>
    %109 = vector.extract_strided_slice %5 {offsets = [2, 0, 0], sizes = [1, 8, 8], strides = [1, 1, 1]} : vector<5x8x8xf32> to vector<1x8x8xf32>
    %110 = vector.shape_cast %109 : vector<1x8x8xf32> to vector<8x8xf32>
    %cst_40 = arith.constant dense<0.000000e+00> : vector<8x12xf32>
    %111 = tpu.matmul %110, %108, %cst_40 {dimension_numbers = #tpu.dot_dimension_numbers<[1], [0], [0], [1], [0, 0, 1, 1], [], []>} : vector<8x8xf32>, vector<8x12xf32>, vector<8x12xf32> -> vector<8x12xf32>
    %112 = arith.addf %107, %111 : vector<8x12xf32>
    %113 = vector.extract_strided_slice %98 {offsets = [0, 2], sizes = [8, 12], strides = [1, 1]} : vector<8x16xf32> to vector<8x12xf32>
    %114 = vector.extract_strided_slice %5 {offsets = [3, 0, 0], sizes = [1, 8, 8], strides = [1, 1, 1]} : vector<5x8x8xf32> to vector<1x8x8xf32>
    %115 = vector.shape_cast %114 : vector<1x8x8xf32> to vector<8x8xf32>
    %cst_41 = arith.constant dense<0.000000e+00> : vector<8x12xf32>
    %116 = tpu.matmul %115, %113, %cst_41 {dimension_numbers = #tpu.dot_dimension_numbers<[1], [0], [0], [1], [0, 0, 1, 1], [], []>} : vector<8x8xf32>, vector<8x12xf32>, vector<8x12xf32> -> vector<8x12xf32>
    %117 = arith.addf %112, %116 : vector<8x12xf32>
    %118 = vector.extract_strided_slice %92 {offsets = [0, 4], sizes = [8, 12], strides = [1, 1]} : vector<8x16xf32> to vector<8x12xf32>
    %119 = vector.extract_strided_slice %5 {offsets = [4, 0, 0], sizes = [1, 8, 8], strides = [1, 1, 1]} : vector<5x8x8xf32> to vector<1x8x8xf32>
    %120 = vector.shape_cast %119 : vector<1x8x8xf32> to vector<8x8xf32>
    %cst_42 = arith.constant dense<0.000000e+00> : vector<8x12xf32>
    %121 = tpu.matmul %120, %118, %cst_42 {dimension_numbers = #tpu.dot_dimension_numbers<[1], [0], [0], [1], [0, 0, 1, 1], [], []>} : vector<8x8xf32>, vector<8x12xf32>, vector<8x12xf32> -> vector<8x12xf32>
    %122 = arith.addf %117, %121 : vector<8x12xf32>
    %c0_43 = arith.constant 0 : index
    %c0_44 = arith.constant 0 : index
    %123 = vector.load %arg6[%c0_43, %c0_44] : memref<8x1xf32, #tpu.memory_space<vmem>>, vector<8x1xf32>
    %c0_45 = arith.constant 0 : index
    %c0_46 = arith.constant 0 : index
    %124 = vector.load %arg7[%c0_45, %c0_46] : memref<8x1xf32, #tpu.memory_space<vmem>>, vector<8x1xf32>
    %cst_47 = arith.constant dense<0.000000e+00> : vector<8xf32>
    %125 = vector.multi_reduction <add>, %122, %cst_47 [1] : vector<8x12xf32> to vector<8xf32>
    %126 = vector.shape_cast %125 : vector<8xf32> to vector<8x1xf32>
    %cst_48 = arith.constant 0.000000e+00 : f32
    %127 = vector.broadcast %cst_48 : f32 to vector<8x1xf32>
    %128 = arith.addf %127, %126 : vector<8x1xf32>
    %129 = arith.mulf %122, %122 : vector<8x12xf32>
    %cst_49 = arith.constant dense<0.000000e+00> : vector<8xf32>
    %130 = vector.multi_reduction <add>, %129, %cst_49 [1] : vector<8x12xf32> to vector<8xf32>
    %131 = vector.shape_cast %130 : vector<8xf32> to vector<8x1xf32>
    %cst_50 = arith.constant 0.000000e+00 : f32
    %132 = vector.broadcast %cst_50 : f32 to vector<8x1xf32>
    %133 = arith.addf %132, %131 : vector<8x1xf32>
    %cst_51 = arith.constant 0.0833333358 : f32
    %134 = vector.broadcast %cst_51 : f32 to vector<8x1xf32>
    %135 = arith.mulf %128, %134 : vector<8x1xf32>
    %cst_52 = arith.constant 0.0833333358 : f32
    %136 = vector.broadcast %cst_52 : f32 to vector<8x1xf32>
    %137 = arith.mulf %133, %136 : vector<8x1xf32>
    %138 = arith.mulf %135, %135 : vector<8x1xf32>
    %139 = arith.subf %137, %138 : vector<8x1xf32>
    %cst_53 = arith.constant 0.000000e+00 : f32
    %140 = vector.broadcast %cst_53 : f32 to vector<8x1xf32>
    %141 = arith.maximumf %139, %140 : vector<8x1xf32>
    %cst_54 = arith.constant 9.99999974E-6 : f32
    %142 = vector.broadcast %cst_54 : f32 to vector<8x1xf32>
    %143 = arith.addf %141, %142 : vector<8x1xf32>
    %144 = math.rsqrt %143 : vector<8x1xf32>
    %145 = arith.mulf %144, %123 : vector<8x1xf32>
    %146 = arith.mulf %135, %145 : vector<8x1xf32>
    %147 = arith.subf %124, %146 : vector<8x1xf32>
    %148 = vector.broadcast %145 : vector<8x1xf32> to vector<8x12xf32>
    %149 = arith.mulf %122, %148 : vector<8x12xf32>
    %150 = vector.broadcast %147 : vector<8x1xf32> to vector<8x12xf32>
    %151 = arith.addf %149, %150 : vector<8x12xf32>
    %cst_55 = arith.constant 0.000000e+00 : f32
    %152 = vector.broadcast %cst_55 : f32 to vector<8x12xf32>
    %153 = arith.maximumf %151, %152 : vector<8x12xf32>
    %cst_56 = arith.constant 0.000000e+00 : f32
    %154 = vector.broadcast %cst_56 : f32 to vector<8x4xf32>
    %155 = tpu.concatenate %154, %153, %154 in 1 : vector<8x4xf32>, vector<8x12xf32>, vector<8x4xf32> -> vector<8x20xf32>
    %156 = vector.extract_strided_slice %155 {offsets = [0, 0], sizes = [8, 12], strides = [1, 1]} : vector<8x20xf32> to vector<8x12xf32>
    %157 = vector.extract_strided_slice %155 {offsets = [0, 2], sizes = [8, 12], strides = [1, 1]} : vector<8x20xf32> to vector<8x12xf32>
    %158 = arith.maximumf %156, %157 : vector<8x12xf32>
    %159 = vector.extract_strided_slice %155 {offsets = [0, 4], sizes = [8, 12], strides = [1, 1]} : vector<8x20xf32> to vector<8x12xf32>
    %160 = arith.maximumf %158, %159 : vector<8x12xf32>
    %161 = vector.extract_strided_slice %155 {offsets = [0, 6], sizes = [8, 12], strides = [1, 1]} : vector<8x20xf32> to vector<8x12xf32>
    %162 = arith.maximumf %160, %161 : vector<8x12xf32>
    %163 = vector.extract_strided_slice %155 {offsets = [0, 8], sizes = [8, 12], strides = [1, 1]} : vector<8x20xf32> to vector<8x12xf32>
    %164 = arith.maximumf %162, %163 : vector<8x12xf32>
    %165 = vector.extract_strided_slice %1 {offsets = [0, 2], sizes = [8, 12], strides = [1, 1]} : vector<8x20xf32> to vector<8x12xf32>
    %166 = vector.extract_strided_slice %6 {offsets = [0, 0, 0], sizes = [1, 8, 8], strides = [1, 1, 1]} : vector<5x8x8xf32> to vector<1x8x8xf32>
    %167 = vector.shape_cast %166 : vector<1x8x8xf32> to vector<8x8xf32>
    %cst_57 = arith.constant dense<0.000000e+00> : vector<8x12xf32>
    %168 = tpu.matmul %167, %165, %cst_57 {dimension_numbers = #tpu.dot_dimension_numbers<[1], [0], [0], [1], [0, 0, 1, 1], [], []>} : vector<8x8xf32>, vector<8x12xf32>, vector<8x12xf32> -> vector<8x12xf32>
    %169 = vector.extract_strided_slice %3 {offsets = [0, 2], sizes = [8, 12], strides = [1, 1]} : vector<8x20xf32> to vector<8x12xf32>
    %170 = vector.extract_strided_slice %6 {offsets = [1, 0, 0], sizes = [1, 8, 8], strides = [1, 1, 1]} : vector<5x8x8xf32> to vector<1x8x8xf32>
    %171 = vector.shape_cast %170 : vector<1x8x8xf32> to vector<8x8xf32>
    %cst_58 = arith.constant dense<0.000000e+00> : vector<8x12xf32>
    %172 = tpu.matmul %171, %169, %cst_58 {dimension_numbers = #tpu.dot_dimension_numbers<[1], [0], [0], [1], [0, 0, 1, 1], [], []>} : vector<8x8xf32>, vector<8x12xf32>, vector<8x12xf32> -> vector<8x12xf32>
    %173 = arith.addf %168, %172 : vector<8x12xf32>
    %174 = vector.extract_strided_slice %1 {offsets = [0, 4], sizes = [8, 12], strides = [1, 1]} : vector<8x20xf32> to vector<8x12xf32>
    %175 = vector.extract_strided_slice %6 {offsets = [2, 0, 0], sizes = [1, 8, 8], strides = [1, 1, 1]} : vector<5x8x8xf32> to vector<1x8x8xf32>
    %176 = vector.shape_cast %175 : vector<1x8x8xf32> to vector<8x8xf32>
    %cst_59 = arith.constant dense<0.000000e+00> : vector<8x12xf32>
    %177 = tpu.matmul %176, %174, %cst_59 {dimension_numbers = #tpu.dot_dimension_numbers<[1], [0], [0], [1], [0, 0, 1, 1], [], []>} : vector<8x8xf32>, vector<8x12xf32>, vector<8x12xf32> -> vector<8x12xf32>
    %178 = arith.addf %173, %177 : vector<8x12xf32>
    %179 = vector.extract_strided_slice %3 {offsets = [0, 4], sizes = [8, 12], strides = [1, 1]} : vector<8x20xf32> to vector<8x12xf32>
    %180 = vector.extract_strided_slice %6 {offsets = [3, 0, 0], sizes = [1, 8, 8], strides = [1, 1, 1]} : vector<5x8x8xf32> to vector<1x8x8xf32>
    %181 = vector.shape_cast %180 : vector<1x8x8xf32> to vector<8x8xf32>
    %cst_60 = arith.constant dense<0.000000e+00> : vector<8x12xf32>
    %182 = tpu.matmul %181, %179, %cst_60 {dimension_numbers = #tpu.dot_dimension_numbers<[1], [0], [0], [1], [0, 0, 1, 1], [], []>} : vector<8x8xf32>, vector<8x12xf32>, vector<8x12xf32> -> vector<8x12xf32>
    %183 = arith.addf %178, %182 : vector<8x12xf32>
    %184 = vector.extract_strided_slice %1 {offsets = [0, 6], sizes = [8, 12], strides = [1, 1]} : vector<8x20xf32> to vector<8x12xf32>
    %185 = vector.extract_strided_slice %6 {offsets = [4, 0, 0], sizes = [1, 8, 8], strides = [1, 1, 1]} : vector<5x8x8xf32> to vector<1x8x8xf32>
    %186 = vector.shape_cast %185 : vector<1x8x8xf32> to vector<8x8xf32>
    %cst_61 = arith.constant dense<0.000000e+00> : vector<8x12xf32>
    %187 = tpu.matmul %186, %184, %cst_61 {dimension_numbers = #tpu.dot_dimension_numbers<[1], [0], [0], [1], [0, 0, 1, 1], [], []>} : vector<8x8xf32>, vector<8x12xf32>, vector<8x12xf32> -> vector<8x12xf32>
    %188 = arith.addf %183, %187 : vector<8x12xf32>
    %c0_62 = arith.constant 0 : index
    %c0_63 = arith.constant 0 : index
    %189 = vector.load %arg8[%c0_62, %c0_63] : memref<8x1xf32, #tpu.memory_space<vmem>>, vector<8x1xf32>
    %190 = vector.broadcast %189 : vector<8x1xf32> to vector<8x12xf32>
    %191 = arith.addf %188, %190 : vector<8x12xf32>
    %192 = arith.addf %164, %191 : vector<8x12xf32>
    %c0_64 = arith.constant 0 : index
    %c0_65 = arith.constant 0 : index
    %193 = vector.load %arg9[%c0_64, %c0_65] : memref<8x12xf32, #tpu.memory_space<vmem>>, vector<8x12xf32>
    tpu.vector_store %arg9[%c0_64, %c0_65], %192 {strides = array<i32>} : memref<8x12xf32, #tpu.memory_space<vmem>>, vector<8x12xf32>,
    return
  }
}

</mosaic_0001>

<llo_original>
// kernel: tpu_custom_call.1
$region0: #{tpu_custom_call.1}
  #allocation0 [shape = 'u32[]', space=smem, size = 0x4, offset = 0x4, fixed_abs, tag = 'smem constant byte address 0x4 - core index']
  #allocation1 [shape = 'u32[72,128]{1,0:T(1,128)}', space=vmem, size = 0x9000, scoped, tag = 'internal scratch']
  %s0 = inlined_call_operand.hbm [shape: f32[2,8,20], index: 0, kind: input, shape index: {}]
  %s1 = inlined_call_operand.vmem [shape: f32[5,8,8], index: 1, kind: input, shape index: {}]
  %s2 = inlined_call_operand.hbm [shape: f32[5,8,8], index: 2, kind: input, shape index: {}]
  %s3 = inlined_call_operand.hbm [shape: f32[5,8,8], index: 3, kind: input, shape index: {}]
  %s4 = inlined_call_operand.vmem [shape: f32[8,1], index: 4, kind: input, shape index: {}]
  %s5 = inlined_call_operand.vmem [shape: f32[8,1], index: 5, kind: input, shape index: {}]
  %s6 = inlined_call_operand.vmem [shape: f32[8,1], index: 6, kind: input, shape index: {}]
  %s7 = inlined_call_operand.vmem [shape: f32[8,1], index: 7, kind: input, shape index: {}]
  %s8 = inlined_call_operand.vmem [shape: f32[8,1], index: 8, kind: input, shape index: {}]
  %s9 = inlined_call_operand.hbm [shape: f32[8,12], index: 9, kind: output, shape index: {}]
  %s10 = sld [smem:[#allocation0]]
  $region58: #{tpu_custom_call.1} parent=0
    _
  %s12 = ssub.s32 1, %s10
  %s13 = scalar_select 0, %s12, %s10
  $region1: #{tpu_custom_call.1} parent=0
    #allocation2 [shape = 'u8[8192]{0}', space=vmem, size = 0x2000, scoped, tag = 'input window, operand 0, single buffered']
    #allocation3 [shape = 's32[1]{0}', space=sflag, size = 0x4, scoped, tag = 'scoped memory for tpu_custom_call.1']
    #allocation4 [shape = 's32[1]{0}', space=sflag, size = 0x4, scoped, tag = 'scoped memory for tpu_custom_call.1']
    #allocation5 [shape = 'u8[20480]{0}', space=vmem, size = 0x5000, scoped, tag = 'input window, operand 2, single buffered']
    #allocation6 [shape = 's32[1]{0}', space=sflag, size = 0x4, scoped, tag = 'scoped memory for tpu_custom_call.1']
    #allocation7 [shape = 'u8[20480]{0}', space=vmem, size = 0x5000, scoped, tag = 'input window, operand 3, single buffered']
    #allocation8 [shape = 'u8[4096]{0}', space=vmem, size = 0x1000, scoped, tag = 'output window, operand 0, single buffered']
    %14 = vsyncpa [#allocation3], 0
    %15 = vsyncpa [#allocation6], 0
    %16 = vsyncpa [#allocation4], 0
    // Predicated region
    $region2: #{tpu_custom_call.1} parent=1 // pred_check
      _
    $region3: #{tpu_custom_call.1} parent=1 // pred_check_branch
      %18 = sbr.rel (0) target = $region5
    $region4: #{tpu_custom_call.1} parent=1 // pred_region
      %20 = vsyncadd [#allocation3], 0
      %s21 = sshll.u32 %s0, 4
      %s22 = int_to_ptr.hbm [resolvable:$true] %s21
      %s23 = sshll.u32 [#allocation2], 4
      %s24 = int_to_ptr.vmem [resolvable:$true] %s23
      %29 = dma.hbm_to_vmem [thread:$0]  %s22, 256, %s24, [#allocation3], 128, 128, 8
    $region5: #{tpu_custom_call.1} parent=1 // pred_fallthru
      _
    // Predicated region
    $region6: #{tpu_custom_call.1} parent=1 // pred_check
      _
    $region7: #{tpu_custom_call.1} parent=1 // pred_check_branch
      %31 = sbr.rel (0) target = $region9
    $region8: #{tpu_custom_call.1} parent=1 // pred_region
      _
    $region9: #{tpu_custom_call.1} parent=1 // pred_fallthru
      _
    // Predicated region
    $region10: #{tpu_custom_call.1} parent=1 // pred_check
      _
    $region11: #{tpu_custom_call.1} parent=1 // pred_check_branch
      %33 = sbr.rel (0) target = $region13
    $region12: #{tpu_custom_call.1} parent=1 // pred_region
      %35 = vsyncadd [#allocation6], 0
      %s36 = sshll.u32 %s2, 4
      %s37 = int_to_ptr.hbm [resolvable:$true] %s36
      %s38 = sshll.u32 [#allocation5], 4
      %s39 = int_to_ptr.vmem [resolvable:$true] %s38
      %44 = dma.hbm_to_vmem [thread:$0]  %s37, 640, %s39, [#allocation6], 128, 128, 8
    $region13: #{tpu_custom_call.1} parent=1 // pred_fallthru
      _
    // Predicated region
    $region14: #{tpu_custom_call.1} parent=1 // pred_check
      _
    $region15: #{tpu_custom_call.1} parent=1 // pred_check_branch
      %46 = sbr.rel (0) target = $region17
    $region16: #{tpu_custom_call.1} parent=1 // pred_region
      %48 = vsyncadd [#allocation6], 0
      %s49 = sshll.u32 %s3, 4
      %s50 = int_to_ptr.hbm [resolvable:$true] %s49
      %s51 = sshll.u32 [#allocation7], 4
      %s52 = int_to_ptr.vmem [resolvable:$true] %s51
      %57 = dma.hbm_to_vmem [thread:$0]  %s50, 640, %s52, [#allocation6], 128, 128, 8
    $region17: #{tpu_custom_call.1} parent=1 // pred_fallthru
      _
    // Predicated region
    $region18: #{tpu_custom_call.1} parent=1 // pred_check
      _
    $region19: #{tpu_custom_call.1} parent=1 // pred_check_branch
      %59 = sbr.rel (0) target = $region21
    $region20: #{tpu_custom_call.1} parent=1 // pred_region
      _
    $region21: #{tpu_custom_call.1} parent=1 // pred_fallthru
      _
    // Predicated region
    $region22: #{tpu_custom_call.1} parent=1 // pred_check
      _
    $region23: #{tpu_custom_call.1} parent=1 // pred_check_branch
      %61 = sbr.rel (0) target = $region25
    $region24: #{tpu_custom_call.1} parent=1 // pred_region
      _
    $region25: #{tpu_custom_call.1} parent=1 // pred_fallthru
      _
    // Predicated region
    $region26: #{tpu_custom_call.1} parent=1 // pred_check
      _
    $region27: #{tpu_custom_call.1} parent=1 // pred_check_branch
      %63 = sbr.rel (0) target = $region29
    $region28: #{tpu_custom_call.1} parent=1 // pred_region
      _
    $region29: #{tpu_custom_call.1} parent=1 // pred_fallthru
      _
    // Predicated region
    $region30: #{tpu_custom_call.1} parent=1 // pred_check
      _
    $region31: #{tpu_custom_call.1} parent=1 // pred_check_branch
      %65 = sbr.rel (0) target = $region33
    $region32: #{tpu_custom_call.1} parent=1 // pred_region
      _
    $region33: #{tpu_custom_call.1} parent=1 // pred_fallthru
      _
    // Predicated region
    $region34: #{tpu_custom_call.1} parent=1 // pred_check
      _
    $region35: #{tpu_custom_call.1} parent=1 // pred_check_branch
      %67 = sbr.rel (0) target = $region37
    $region36: #{tpu_custom_call.1} parent=1 // pred_region
      _
    $region37: #{tpu_custom_call.1} parent=1 // pred_fallthru
      _
    // Predicated region
    $region38: #{tpu_custom_call.1} parent=1 // pred_check
      _
    $region39: #{tpu_custom_call.1} parent=1 // pred_check_branch
      %69 = sbr.rel (0) target = $region41
    $region40: #{tpu_custom_call.1} parent=1 // pred_region
      %71 = dma.done [#allocation3], 256
    $region41: #{tpu_custom_call.1} parent=1 // pred_fallthru
      _
    // Predicated region
    $region42: #{tpu_custom_call.1} parent=1 // pred_check
      _
    $region43: #{tpu_custom_call.1} parent=1 // pred_check_branch
      %73 = sbr.rel (0) target = $region45
    $region44: #{tpu_custom_call.1} parent=1 // pred_region
      %75 = dma.done [#allocation6], 640
    $region45: #{tpu_custom_call.1} parent=1 // pred_fallthru
      _
    // Predicated region
    $region46: #{tpu_custom_call.1} parent=1 // pred_check
      _
    $region47: #{tpu_custom_call.1} parent=1 // pred_check_branch
      %77 = sbr.rel (0) target = $region49
    $region48: #{tpu_custom_call.1} parent=1 // pred_region
      %79 = dma.done [#allocation6], 640
    $region49: #{tpu_custom_call.1} parent=1 // pred_fallthru
      _
    %v80 = vld [vmem:[#allocation2] sm:$0xff]
    %s81 = scalar_lea.vmem [#allocation2], 8
    %v82 = vld [vmem:[%s81] sm:$0xff]
    %v83 = vld [vmem:[%s1] sm:$0xff]
    %v84 = vld [vmem:[%s1 + $0x8] sm:$0xff]
    %v85 = vld [vmem:[%s1 + $0x10] sm:$0xff]
    %v86 = vld [vmem:[%s1 + $0x18] sm:$0xff]
    %v87 = vld [vmem:[%s1 + $0x20] sm:$0xff]
    %v88 = vld [vmem:[#allocation5] sm:$0xff]
    %v89 = vld [vmem:[#allocation5 + $0x8] sm:$0xff]
    %v90 = vld [vmem:[#allocation5 + $0x10] sm:$0xff]
    %v91 = vld [vmem:[#allocation5 + $0x18] sm:$0xff]
    %v92 = vld [vmem:[#allocation5 + $0x20] sm:$0xff]
    %v93 = vld [vmem:[#allocation7] sm:$0xff]
    %v94 = vld [vmem:[#allocation7 + $0x8] sm:$0xff]
    %v95 = vld [vmem:[#allocation7 + $0x10] sm:$0xff]
    %v96 = vld [vmem:[#allocation7 + $0x18] sm:$0xff]
    %v97 = vld [vmem:[#allocation7 + $0x20] sm:$0xff]
    %vm98 = vcmask 64512
    %v100 = vsel %vm98, %v84, 0
    %102 = vmatpush.msra.mxu0 0.0
    %103 = vmatpush.msra.mxu0 0.0
    %104 = vmatpush.msra.mxu0 0.0
    %105 = vmatpush.msra.mxu0 0.0
    %106 = vmatpush.msra.mxu0 0.0
    %107 = vmatpush.msra.mxu0 0.0
    %108 = vmatpush.msra.mxu0 0.0
    %109 = vmatpush.msra.mxu0 0.0
    %110 = vmatpush.msra.mxu0 0.0
    %111 = vmatpush.msra.mxu0 0.0
    %112 = vmatpush.msra.mxu0 0.0
    %113 = vmatpush.msra.mxu0 0.0
    %114 = vmatpush.msra.mxu0 0.0
    %115 = vmatpush.msra.mxu0 0.0
    %116 = vmatpush.msra.mxu0 0.0
    %117 = vmatpush.msra.mxu0 %v82
    %118 = vmatmul.f32.gmra.mxu0 %v100
    %v119 = vpop.f32.mrf.mxu0
    %v120 = vadd.f32 0.0, %v119
    %121 = vdwg.mxu0
    %v123 = vsel %vm98, %v83, 0
    %125 = vmatpush.msra.mxu0 0.0
    %126 = vmatpush.msra.mxu0 0.0
    %127 = vmatpush.msra.mxu0 0.0
    %128 = vmatpush.msra.mxu0 0.0
    %129 = vmatpush.msra.mxu0 0.0
    %130 = vmatpush.msra.mxu0 0.0
    %131 = vmatpush.msra.mxu0 0.0
    %132 = vmatpush.msra.mxu0 0.0
    %133 = vmatpush.msra.mxu0 0.0
    %134 = vmatpush.msra.mxu0 0.0
    %135 = vmatpush.msra.mxu0 0.0
    %136 = vmatpush.msra.mxu0 0.0
    %137 = vmatpush.msra.mxu0 0.0
    %138 = vmatpush.msra.mxu0 0.0
    %139 = vmatpush.msra.mxu0 0.0
    %140 = vmatpush.msra.mxu0 %v80
    %141 = vmatmul.f32.gmra.mxu0 %v123
    %v142 = vpop.f32.mrf.mxu0
    %v143 = vadd.f32 %v120, %v142
    %144 = vdwg.mxu0
    %146 = vrot.lane.b32.xlu0 %v80, 126
    %v147 = vpop.permute.xlu0 %146
    %v150 = vsel %vm98, %v85, 0
    %152 = vmatpush.msra.mxu0 0.0
    %153 = vmatpush.msra.mxu0 0.0
    %154 = vmatpush.msra.mxu0 0.0
    %155 = vmatpush.msra.mxu0 0.0
    %156 = vmatpush.msra.mxu0 0.0
    %157 = vmatpush.msra.mxu0 0.0
    %158 = vmatpush.msra.mxu0 0.0
    %159 = vmatpush.msra.mxu0 0.0
    %160 = vmatpush.msra.mxu0 0.0
    %161 = vmatpush.msra.mxu0 0.0
    %162 = vmatpush.msra.mxu0 0.0
    %163 = vmatpush.msra.mxu0 0.0
    %164 = vmatpush.msra.mxu0 0.0
    %165 = vmatpush.msra.mxu0 0.0
    %166 = vmatpush.msra.mxu0 0.0
    %167 = vmatpush.msra.mxu0 %v147
    %168 = vmatmul.f32.gmra.mxu0 %v150
    %v169 = vpop.f32.mrf.mxu0
    %v170 = vadd.f32 0.0, %v169
    %171 = vdwg.mxu0
    %v172 = vadd.f32 %v143, %v170
    %174 = vrot.lane.b32.xlu0 %v82, 126
    %v175 = vpop.permute.xlu0 %174
    %v178 = vsel %vm98, %v86, 0
    %180 = vmatpush.msra.mxu0 0.0
    %181 = vmatpush.msra.mxu0 0.0
    %182 = vmatpush.msra.mxu0 0.0
    %183 = vmatpush.msra.mxu0 0.0
    %184 = vmatpush.msra.mxu0 0.0
    %185 = vmatpush.msra.mxu0 0.0
    %186 = vmatpush.msra.mxu0 0.0
    %187 = vmatpush.msra.mxu0 0.0
    %188 = vmatpush.msra.mxu0 0.0
    %189 = vmatpush.msra.mxu0 0.0
    %190 = vmatpush.msra.mxu0 0.0
    %191 = vmatpush.msra.mxu0 0.0
    %192 = vmatpush.msra.mxu0 0.0
    %193 = vmatpush.msra.mxu0 0.0
    %194 = vmatpush.msra.mxu0 0.0
    %195 = vmatpush.msra.mxu0 %v175
    %196 = vmatmul.f32.gmra.mxu0 %v178
    %v197 = vpop.f32.mrf.mxu0
    %v198 = vadd.f32 0.0, %v197
    %199 = vdwg.mxu0
    %v200 = vadd.f32 %v172, %v198
    %201 = vrot.lane.b32.xlu0 %v80, 124
    %v202 = vpop.permute.xlu0 %201
    %v205 = vsel %vm98, %v87, 0
    %207 = vmatpush.msra.mxu0 0.0
    %208 = vmatpush.msra.mxu0 0.0
    %209 = vmatpush.msra.mxu0 0.0
    %210 = vmatpush.msra.mxu0 0.0
    %211 = vmatpush.msra.mxu0 0.0
    %212 = vmatpush.msra.mxu0 0.0
    %213 = vmatpush.msra.mxu0 0.0
    %214 = vmatpush.msra.mxu0 0.0
    %215 = vmatpush.msra.mxu0 0.0
    %216 = vmatpush.msra.mxu0 0.0
    %217 = vmatpush.msra.mxu0 0.0
    %218 = vmatpush.msra.mxu0 0.0
    %219 = vmatpush.msra.mxu0 0.0
    %220 = vmatpush.msra.mxu0 0.0
    %221 = vmatpush.msra.mxu0 0.0
    %222 = vmatpush.msra.mxu0 %v202
    %223 = vmatmul.f32.gmra.mxu0 %v205
    %v224 = vpop.f32.mrf.mxu0
    %v225 = vadd.f32 0.0, %v224
    %226 = vdwg.mxu0
    %v227 = vadd.f32 %v200, %v225
    %228 = vmatpush.msra.mxu0 0.0
    %229 = vmatpush.msra.mxu0 0.0
    %230 = vmatpush.msra.mxu0 0.0
    %231 = vmatpush.msra.mxu0 0.0
    %232 = vmatpush.msra.mxu0 0.0
    %233 = vmatpush.msra.mxu0 0.0
    %234 = vmatpush.msra.mxu0 0.0
    %235 = vmatpush.msra.mxu0 0.0
    %236 = vmatpush.msra.mxu0 0.0
    %237 = vmatpush.msra.mxu0 0.0
    %238 = vmatpush.msra.mxu0 0.0
    %239 = vmatpush.msra.mxu0 0.0
    %240 = vmatpush.msra.mxu0 0.0
    %241 = vmatpush.msra.mxu0 0.0
    %242 = vmatpush.msra.mxu0 0.0
    %243 = vmatpush.msra.mxu0 %v147
    %244 = vmatmul.f32.gmra.mxu0 %v100
    %v245 = vpop.f32.mrf.mxu0
    %v246 = vadd.f32 0.0, %v245
    %247 = vdwg.mxu0
    %248 = vmatpush.msra.mxu0 0.0
    %249 = vmatpush.msra.mxu0 0.0
    %250 = vmatpush.msra.mxu0 0.0
    %251 = vmatpush.msra.mxu0 0.0
    %252 = vmatpush.msra.mxu0 0.0
    %253 = vmatpush.msra.mxu0 0.0
    %254 = vmatpush.msra.mxu0 0.0
    %255 = vmatpush.msra.mxu0 0.0
    %256 = vmatpush.msra.mxu0 0.0
    %257 = vmatpush.msra.mxu0 0.0
    %258 = vmatpush.msra.mxu0 0.0
    %259 = vmatpush.msra.mxu0 0.0
    %260 = vmatpush.msra.mxu0 0.0
    %261 = vmatpush.msra.mxu0 0.0
    %262 = vmatpush.msra.mxu0 0.0
    %263 = vmatpush.msra.mxu0 %v82
    %264 = vmatmul.f32.gmra.mxu0 %v123
    %v265 = vpop.f32.mrf.mxu0
    %v266 = vadd.f32 %v246, %v265
    %267 = vdwg.mxu0
    %268 = vmatpush.msra.mxu0 0.0
    %269 = vmatpush.msra.mxu0 0.0
    %270 = vmatpush.msra.mxu0 0.0
    %271 = vmatpush.msra.mxu0 0.0
    %272 = vmatpush.msra.mxu0 0.0
    %273 = vmatpush.msra.mxu0 0.0
    %274 = vmatpush.msra.mxu0 0.0
    %275 = vmatpush.msra.mxu0 0.0
    %276 = vmatpush.msra.mxu0 0.0
    %277 = vmatpush.msra.mxu0 0.0
    %278 = vmatpush.msra.mxu0 0.0
    %279 = vmatpush.msra.mxu0 0.0
    %280 = vmatpush.msra.mxu0 0.0
    %281 = vmatpush.msra.mxu0 0.0
    %282 = vmatpush.msra.mxu0 0.0
    %283 = vmatpush.msra.mxu0 %v175
    %284 = vmatmul.f32.gmra.mxu0 %v150
    %v285 = vpop.f32.mrf.mxu0
    %v286 = vadd.f32 0.0, %v285
    %287 = vdwg.mxu0
    %v288 = vadd.f32 %v266, %v286
    %289 = vmatpush.msra.mxu0 0.0
    %290 = vmatpush.msra.mxu0 0.0
    %291 = vmatpush.msra.mxu0 0.0
    %292 = vmatpush.msra.mxu0 0.0
    %293 = vmatpush.msra.mxu0 0.0
    %294 = vmatpush.msra.mxu0 0.0
    %295 = vmatpush.msra.mxu0 0.0
    %296 = vmatpush.msra.mxu0 0.0
    %297 = vmatpush.msra.mxu0 0.0
    %298 = vmatpush.msra.mxu0 0.0
    %299 = vmatpush.msra.mxu0 0.0
    %300 = vmatpush.msra.mxu0 0.0
    %301 = vmatpush.msra.mxu0 0.0
    %302 = vmatpush.msra.mxu0 0.0
    %303 = vmatpush.msra.mxu0 0.0
    %304 = vmatpush.msra.mxu0 %v202
    %305 = vmatmul.f32.gmra.mxu0 %v178
    %v306 = vpop.f32.mrf.mxu0
    %v307 = vadd.f32 0.0, %v306
    %308 = vdwg.mxu0
    %v309 = vadd.f32 %v288, %v307
    %310 = vrot.lane.b32.xlu0 %v82, 124
    %v311 = vpop.permute.xlu0 %310
    %313 = vmatpush.msra.mxu0 0.0
    %314 = vmatpush.msra.mxu0 0.0
    %315 = vmatpush.msra.mxu0 0.0
    %316 = vmatpush.msra.mxu0 0.0
    %317 = vmatpush.msra.mxu0 0.0
    %318 = vmatpush.msra.mxu0 0.0
    %319 = vmatpush.msra.mxu0 0.0
    %320 = vmatpush.msra.mxu0 0.0
    %321 = vmatpush.msra.mxu0 0.0
    %322 = vmatpush.msra.mxu0 0.0
    %323 = vmatpush.msra.mxu0 0.0
    %324 = vmatpush.msra.mxu0 0.0
    %325 = vmatpush.msra.mxu0 0.0
    %326 = vmatpush.msra.mxu0 0.0
    %327 = vmatpush.msra.mxu0 0.0
    %328 = vmatpush.msra.mxu0 %v311
    %329 = vmatmul.f32.gmra.mxu0 %v205
    %v330 = vpop.f32.mrf.mxu0
    %v331 = vadd.f32 0.0, %v330
    %332 = vdwg.mxu0
    %v333 = vadd.f32 %v309, %v331
    %v334 = vld [vmem:[%s4] sm:$0xff]
    %v335 = vld [vmem:[%s5] sm:$0xff]
    %vm336 = vcmask 130048
    %v337 = vsel %vm336, %v227, 0.0
    %338 = vadd.xlane.f32.xlu0 %v337
    %v339 = vpop.xlane.xlu0 %338
    %v340 = vadd.f32 %v339, 0.0
    %v341 = vsel %vm336, %v333, 0.0
    %342 = vadd.xlane.f32.xlu0 %v341
    %v343 = vpop.xlane.xlu0 %342
    %v344 = vadd.f32 %v340, %v343
    %v345 = vmul.f32 %v227, %v227
    %v346 = vsel %vm336, %v345, 0.0
    %347 = vadd.xlane.f32.xlu0 %v346
    %v348 = vpop.xlane.xlu0 %347
    %v349 = vadd.f32 %v348, 0.0
    %v350 = vmul.f32 %v333, %v333
    %v351 = vsel %vm336, %v350, 0.0
    %352 = vadd.xlane.f32.xlu0 %v351
    %v353 = vpop.xlane.xlu0 %352
    %v354 = vadd.f32 %v349, %v353
    %v355 = vmul.f32 %v344, 0.03125
    %v356 = vmul.f32 %v354, 0.03125
    %v357 = vmul.f32 %v355, %v355
    %v358 = vsub.f32 %v356, %v357
    %v359 = vmax.f32 %v358, 0.0
    %v360 = vadd.f32 %v359, 1e-05
    %v361 = vrsqrt.pop %v360
    %v362 = vmul.f32 %v361, %v360
    %v363 = vmul.f32 %v362, %v361
    %v364 = vmul.f32 0.5, %v363
    %v365 = vsub.f32 1.5, %v364
    %v366 = vmul.f32 %v361, %v365
    %vm367 = vweird.f32 %v360
    %vm368 = vweird.f32 %v361
    %vm369 = vmor %vm367, %vm368
    %v370 = vsel %vm369, %v361, %v366
    %v371 = vmul.f32 %v370, %v334
    %v372 = vmul.f32 %v355, %v371
    %v373 = vsub.f32 %v335, %v372
    %375 = vset.pattern.permute.xlu0 0
    %376 = vperm.xlu0 %375, %v371
    %v377 = vpop.permute.xlu0 %376
    %v379 = vmul.f32 %v227, %v377
    %381 = vset.pattern.permute.xlu0 0
    %382 = vperm.xlu0 %381, %v373
    %v383 = vpop.permute.xlu0 %382
    %v385 = vadd.f32 %v379, %v383
    %v386 = vmax.f32 %v385, 0.0
    %v387 = vmul.f32 %v333, %v377
    %v388 = vadd.f32 %v387, %v383
    %v389 = vmax.f32 %v388, 0.0
    %v391 = vsel %vm98, %v89, 0
    %393 = vmatpush.msra.mxu0 0.0
    %394 = vmatpush.msra.mxu0 0.0
    %395 = vmatpush.msra.mxu0 0.0
    %396 = vmatpush.msra.mxu0 0.0
    %397 = vmatpush.msra.mxu0 0.0
    %398 = vmatpush.msra.mxu0 0.0
    %399 = vmatpush.msra.mxu0 0.0
    %400 = vmatpush.msra.mxu0 0.0
    %401 = vmatpush.msra.mxu0 0.0
    %402 = vmatpush.msra.mxu0 0.0
    %403 = vmatpush.msra.mxu0 0.0
    %404 = vmatpush.msra.mxu0 0.0
    %405 = vmatpush.msra.mxu0 0.0
    %406 = vmatpush.msra.mxu0 0.0
    %407 = vmatpush.msra.mxu0 0.0
    %408 = vmatpush.msra.mxu0 %v389
    %409 = vmatmul.f32.gmra.mxu0 %v391
    %v410 = vpop.f32.mrf.mxu0
    %v411 = vadd.f32 0.0, %v410
    %412 = vdwg.mxu0
    %v414 = vsel %vm98, %v88, 0
    %416 = vmatpush.msra.mxu0 0.0
    %417 = vmatpush.msra.mxu0 0.0
    %418 = vmatpush.msra.mxu0 0.0
    %419 = vmatpush.msra.mxu0 0.0
    %420 = vmatpush.msra.mxu0 0.0
    %421 = vmatpush.msra.mxu0 0.0
    %422 = vmatpush.msra.mxu0 0.0
    %423 = vmatpush.msra.mxu0 0.0
    %424 = vmatpush.msra.mxu0 0.0
    %425 = vmatpush.msra.mxu0 0.0
    %426 = vmatpush.msra.mxu0 0.0
    %427 = vmatpush.msra.mxu0 0.0
    %428 = vmatpush.msra.mxu0 0.0
    %429 = vmatpush.msra.mxu0 0.0
    %430 = vmatpush.msra.mxu0 0.0
    %431 = vmatpush.msra.mxu0 %v386
    %432 = vmatmul.f32.gmra.mxu0 %v414
    %v433 = vpop.f32.mrf.mxu0
    %v434 = vadd.f32 %v411, %v433
    %435 = vdwg.mxu0
    %437 = vrot.lane.b32.xlu0 %v386, 126
    %v438 = vpop.permute.xlu0 %437
    %v441 = vsel %vm98, %v90, 0
    %443 = vmatpush.msra.mxu0 0.0
    %444 = vmatpush.msra.mxu0 0.0
    %445 = vmatpush.msra.mxu0 0.0
    %446 = vmatpush.msra.mxu0 0.0
    %447 = vmatpush.msra.mxu0 0.0
    %448 = vmatpush.msra.mxu0 0.0
    %449 = vmatpush.msra.mxu0 0.0
    %450 = vmatpush.msra.mxu0 0.0
    %451 = vmatpush.msra.mxu0 0.0
    %452 = vmatpush.msra.mxu0 0.0
    %453 = vmatpush.msra.mxu0 0.0
    %454 = vmatpush.msra.mxu0 0.0
    %455 = vmatpush.msra.mxu0 0.0
    %456 = vmatpush.msra.mxu0 0.0
    %457 = vmatpush.msra.mxu0 0.0
    %458 = vmatpush.msra.mxu0 %v438
    %459 = vmatmul.f32.gmra.mxu0 %v441
    %v460 = vpop.f32.mrf.mxu0
    %v461 = vadd.f32 0.0, %v460
    %462 = vdwg.mxu0
    %v463 = vadd.f32 %v434, %v461
    %465 = vrot.lane.b32.xlu0 %v389, 126
    %v466 = vpop.permute.xlu0 %465
    %v469 = vsel %vm98, %v91, 0
    %471 = vmatpush.msra.mxu0 0.0
    %472 = vmatpush.msra.mxu0 0.0
    %473 = vmatpush.msra.mxu0 0.0
    %474 = vmatpush.msra.mxu0 0.0
    %475 = vmatpush.msra.mxu0 0.0
    %476 = vmatpush.msra.mxu0 0.0
    %477 = vmatpush.msra.mxu0 0.0
    %478 = vmatpush.msra.mxu0 0.0
    %479 = vmatpush.msra.mxu0 0.0
    %480 = vmatpush.msra.mxu0 0.0
    %481 = vmatpush.msra.mxu0 0.0
    %482 = vmatpush.msra.mxu0 0.0
    %483 = vmatpush.msra.mxu0 0.0
    %484 = vmatpush.msra.mxu0 0.0
    %485 = vmatpush.msra.mxu0 0.0
    %486 = vmatpush.msra.mxu0 %v466
    %487 = vmatmul.f32.gmra.mxu0 %v469
    %v488 = vpop.f32.mrf.mxu0
    %v489 = vadd.f32 0.0, %v488
    %490 = vdwg.mxu0
    %v491 = vadd.f32 %v463, %v489
    %492 = vrot.lane.b32.xlu0 %v386, 124
    %v493 = vpop.permute.xlu0 %492
    %v496 = vsel %vm98, %v92, 0
    %498 = vmatpush.msra.mxu0 0.0
    %499 = vmatpush.msra.mxu0 0.0
    %500 = vmatpush.msra.mxu0 0.0
    %501 = vmatpush.msra.mxu0 0.0
    %502 = vmatpush.msra.mxu0 0.0
    %503 = vmatpush.msra.mxu0 0.0
    %504 = vmatpush.msra.mxu0 0.0
    %505 = vmatpush.msra.mxu0 0.0
    %506 = vmatpush.msra.mxu0 0.0
    %507 = vmatpush.msra.mxu0 0.0
    %508 = vmatpush.msra.mxu0 0.0
    %509 = vmatpush.msra.mxu0 0.0
    %510 = vmatpush.msra.mxu0 0.0
    %511 = vmatpush.msra.mxu0 0.0
    %512 = vmatpush.msra.mxu0 0.0
    %513 = vmatpush.msra.mxu0 %v493
    %514 = vmatmul.f32.gmra.mxu0 %v496
    %v515 = vpop.f32.mrf.mxu0
    %v516 = vadd.f32 0.0, %v515
    %517 = vdwg.mxu0
    %v518 = vadd.f32 %v491, %v516
    %v519 = vld [vmem:[%s6] sm:$0xff]
    %v520 = vld [vmem:[%s7] sm:$0xff]
    %vm521 = vcmask 97280
    %v522 = vsel %vm521, %v518, 0.0
    %523 = vadd.xlane.f32.xlu0 %v522
    %v524 = vpop.xlane.xlu0 %523
    %v525 = vadd.f32 %v524, 0.0
    %v526 = vmul.f32 %v518, %v518
    %v527 = vsel %vm521, %v526, 0.0
    %528 = vadd.xlane.f32.xlu0 %v527
    %v529 = vpop.xlane.xlu0 %528
    %v530 = vadd.f32 %v529, 0.0
    %v531 = vmul.f32 %v525, 0.083333336
    %v532 = vmul.f32 %v530, 0.083333336
    %v533 = vmul.f32 %v531, %v531
    %v534 = vsub.f32 %v532, %v533
    %v535 = vmax.f32 %v534, 0.0
    %v536 = vadd.f32 %v535, 1e-05
    %v537 = vrsqrt.pop %v536
    %v538 = vmul.f32 %v537, %v536
    %v539 = vmul.f32 %v538, %v537
    %v540 = vmul.f32 0.5, %v539
    %v541 = vsub.f32 1.5, %v540
    %v542 = vmul.f32 %v537, %v541
    %vm543 = vweird.f32 %v536
    %vm544 = vweird.f32 %v537
    %vm545 = vmor %vm543, %vm544
    %v546 = vsel %vm545, %v537, %v542
    %v547 = vmul.f32 %v546, %v519
    %v548 = vmul.f32 %v531, %v547
    %v549 = vsub.f32 %v520, %v548
    %551 = vset.pattern.permute.xlu0 0
    %552 = vperm.xlu0 %551, %v547
    %v553 = vpop.permute.xlu0 %552
    %v555 = vmul.f32 %v518, %v553
    %557 = vset.pattern.permute.xlu0 0
    %558 = vperm.xlu0 %557, %v549
    %v559 = vpop.permute.xlu0 %558
    %v561 = vadd.f32 %v555, %v559
    %v562 = vmax.f32 %v561, 0.0
    %564 = vrot.lane.b32.xlu0 %v562, 4
    %v565 = vpop.permute.xlu0 %564
    %vm567 = vcmask 31744
    %v568 = vsel %vm567, 0.0, %v565
    %v569 = vsel %vm336, %v568, 0.0
    %571 = vrot.lane.b32.xlu0 %v569, 126
    %v572 = vpop.permute.xlu0 %571
    %v574 = vmax.f32 %v569, %v572
    %575 = vrot.lane.b32.xlu0 %v569, 124
    %v576 = vpop.permute.xlu0 %575
    %v578 = vmax.f32 %v574, %v576
    %579 = vrot.lane.b32.xlu0 %v569, 122
    %v580 = vpop.permute.xlu0 %579
    %v582 = vmax.f32 %v578, %v580
    %583 = vrot.lane.b32.xlu0 %v569, 120
    %v584 = vpop.permute.xlu0 %583
    %v586 = vmax.f32 %v582, %v584
    %v588 = vsel %vm98, %v94, 0
    %590 = vmatpush.msra.mxu0 0.0
    %591 = vmatpush.msra.mxu0 0.0
    %592 = vmatpush.msra.mxu0 0.0
    %593 = vmatpush.msra.mxu0 0.0
    %594 = vmatpush.msra.mxu0 0.0
    %595 = vmatpush.msra.mxu0 0.0
    %596 = vmatpush.msra.mxu0 0.0
    %597 = vmatpush.msra.mxu0 0.0
    %598 = vmatpush.msra.mxu0 0.0
    %599 = vmatpush.msra.mxu0 0.0
    %600 = vmatpush.msra.mxu0 0.0
    %601 = vmatpush.msra.mxu0 0.0
    %602 = vmatpush.msra.mxu0 0.0
    %603 = vmatpush.msra.mxu0 0.0
    %604 = vmatpush.msra.mxu0 0.0
    %605 = vmatpush.msra.mxu0 %v175
    %606 = vmatmul.f32.gmra.mxu0 %v588
    %v607 = vpop.f32.mrf.mxu0
    %v608 = vadd.f32 0.0, %v607
    %609 = vdwg.mxu0
    %v611 = vsel %vm98, %v93, 0
    %613 = vmatpush.msra.mxu0 0.0
    %614 = vmatpush.msra.mxu0 0.0
    %615 = vmatpush.msra.mxu0 0.0
    %616 = vmatpush.msra.mxu0 0.0
    %617 = vmatpush.msra.mxu0 0.0
    %618 = vmatpush.msra.mxu0 0.0
    %619 = vmatpush.msra.mxu0 0.0
    %620 = vmatpush.msra.mxu0 0.0
    %621 = vmatpush.msra.mxu0 0.0
    %622 = vmatpush.msra.mxu0 0.0
    %623 = vmatpush.msra.mxu0 0.0
    %624 = vmatpush.msra.mxu0 0.0
    %625 = vmatpush.msra.mxu0 0.0
    %626 = vmatpush.msra.mxu0 0.0
    %627 = vmatpush.msra.mxu0 0.0
    %628 = vmatpush.msra.mxu0 %v147
    %629 = vmatmul.f32.gmra.mxu0 %v611
    %v630 = vpop.f32.mrf.mxu0
    %v631 = vadd.f32 %v608, %v630
    %632 = vdwg.mxu0
    %v634 = vsel %vm98, %v95, 0
    %636 = vmatpush.msra.mxu0 0.0
    %637 = vmatpush.msra.mxu0 0.0
    %638 = vmatpush.msra.mxu0 0.0
    %639 = vmatpush.msra.mxu0 0.0
    %640 = vmatpush.msra.mxu0 0.0
    %641 = vmatpush.msra.mxu0 0.0
    %642 = vmatpush.msra.mxu0 0.0
    %643 = vmatpush.msra.mxu0 0.0
    %644 = vmatpush.msra.mxu0 0.0
    %645 = vmatpush.msra.mxu0 0.0
    %646 = vmatpush.msra.mxu0 0.0
    %647 = vmatpush.msra.mxu0 0.0
    %648 = vmatpush.msra.mxu0 0.0
    %649 = vmatpush.msra.mxu0 0.0
    %650 = vmatpush.msra.mxu0 0.0
    %651 = vmatpush.msra.mxu0 %v202
    %652 = vmatmul.f32.gmra.mxu0 %v634
    %v653 = vpop.f32.mrf.mxu0
    %v654 = vadd.f32 0.0, %v653
    %655 = vdwg.mxu0
    %v656 = vadd.f32 %v631, %v654
    %v658 = vsel %vm98, %v96, 0
    %660 = vmatpush.msra.mxu0 0.0
    %661 = vmatpush.msra.mxu0 0.0
    %662 = vmatpush.msra.mxu0 0.0
    %663 = vmatpush.msra.mxu0 0.0
    %664 = vmatpush.msra.mxu0 0.0
    %665 = vmatpush.msra.mxu0 0.0
    %666 = vmatpush.msra.mxu0 0.0
    %667 = vmatpush.msra.mxu0 0.0
    %668 = vmatpush.msra.mxu0 0.0
    %669 = vmatpush.msra.mxu0 0.0
    %670 = vmatpush.msra.mxu0 0.0
    %671 = vmatpush.msra.mxu0 0.0
    %672 = vmatpush.msra.mxu0 0.0
    %673 = vmatpush.msra.mxu0 0.0
    %674 = vmatpush.msra.mxu0 0.0
    %675 = vmatpush.msra.mxu0 %v311
    %676 = vmatmul.f32.gmra.mxu0 %v658
    %v677 = vpop.f32.mrf.mxu0
    %v678 = vadd.f32 0.0, %v677
    %679 = vdwg.mxu0
    %v680 = vadd.f32 %v656, %v678
    %681 = vrot.lane.b32.xlu0 %v80, 122
    %v682 = vpop.permute.xlu0 %681
    %v685 = vsel %vm98, %v97, 0
    %687 = vmatpush.msra.mxu0 0.0
    %688 = vmatpush.msra.mxu0 0.0
    %689 = vmatpush.msra.mxu0 0.0
    %690 = vmatpush.msra.mxu0 0.0
    %691 = vmatpush.msra.mxu0 0.0
    %692 = vmatpush.msra.mxu0 0.0
    %693 = vmatpush.msra.mxu0 0.0
    %694 = vmatpush.msra.mxu0 0.0
    %695 = vmatpush.msra.mxu0 0.0
    %696 = vmatpush.msra.mxu0 0.0
    %697 = vmatpush.msra.mxu0 0.0
    %698 = vmatpush.msra.mxu0 0.0
    %699 = vmatpush.msra.mxu0 0.0
    %700 = vmatpush.msra.mxu0 0.0
    %701 = vmatpush.msra.mxu0 0.0
    %702 = vmatpush.msra.mxu0 %v682
    %703 = vmatmul.f32.gmra.mxu0 %v685
    %v704 = vpop.f32.mrf.mxu0
    %v705 = vadd.f32 0.0, %v704
    %706 = vdwg.mxu0
    %v707 = vadd.f32 %v680, %v705
    %v708 = vld [vmem:[%s8] sm:$0xff]
    %710 = vset.pattern.permute.xlu0 0
    %711 = vperm.xlu0 %710, %v708
    %v712 = vpop.permute.xlu0 %711
    %v714 = vadd.f32 %v707, %v712
    %v715 = vadd.f32 %v586, %v714
    %716 = vst.msk [vmem:[#allocation8] sm:$0xff] %vm521, %v715
    // Predicated region
    $region50: #{tpu_custom_call.1} parent=1 // pred_check
      _
    $region51: #{tpu_custom_call.1} parent=1 // pred_check_branch
      %718 = sbr.rel (0) target = $region53
    $region52: #{tpu_custom_call.1} parent=1 // pred_region
      %720 = vsyncadd [#allocation4], 0
      %s722 = sshll.u32 [#allocation8], 4
      %s723 = int_to_ptr.vmem [resolvable:$true] %s722
      %s724 = sshll.u32 %s9, 4
      %s725 = int_to_ptr.hbm [resolvable:$true] %s724
      %727 = dma.vmem_to_hbm [thread:$0]  %s723, 128, %s725, [#allocation4]
    $region53: #{tpu_custom_call.1} parent=1 // pred_fallthru
      _
    // Predicated region
    $region54: #{tpu_custom_call.1} parent=1 // pred_check
      _
    $region55: #{tpu_custom_call.1} parent=1 // pred_check_branch
      %729 = sbr.rel (0) target = $region57
    $region56: #{tpu_custom_call.1} parent=1 // pred_region
      %731 = dma.done [#allocation4], 128
    $region57: #{tpu_custom_call.1} parent=1 // pred_fallthru
      _
    %732 = vsyncpa [#allocation3], 1
    %733 = vsyncpa [#allocation6], 1
    %734 = vsyncpa [#allocation4], 1

</llo_original>
